<compile_context>
chip_gen: v5e
topology: v5e:2x2
jax: 0.10.0
libtpu: 0.0.40
codegen_flags: <defaults>
</compile_context>

<pallas_src>
import functools

import jax
import jax.numpy as jnp
from jax import lax
from jax.experimental import pallas as pl
from jax.experimental.pallas import tpu as pltpu


def _round_up(x, m):
    return (x + m - 1) // m * m


def _pick_row_tile(L, row_bytes, vmem_budget=8 << 20, max_rows=2048):
    """Largest divisor of L that is a multiple of 8 and fits the byte budget.

    An exact divisor means no M padding and no post-kernel slice.  Falls back
    to L itself (a block dim equal to the full array dim is always legal), e.g.
    for tiny images where L < 8 or L has no multiple-of-8 divisor.
    """
    cap = max(8, min(max_rows, vmem_budget // max(row_bytes, 1)))
    for t in range(min(cap, L), 7, -1):
        if L % t == 0 and t % 8 == 0:
            return t
    return L


def _patch_embed_kernel(x_ref, w_ref, b_ref, o_ref):
    # x_ref: (1, TL, K)  flattened-patch tile (compute dtype, e.g. bf16)
    # w_ref: (K, E)      projection weight, constant block index (VMEM-resident)
    # b_ref: (1, E)      f32 bias
    # o_ref: (1, TL, E)  unpadded output tile in the final layout (no post-slice)
    acc = jnp.dot(x_ref[0], w_ref[...], preferred_element_type=jnp.float32)
    o_ref[0] = (acc + b_ref[...]).astype(o_ref.dtype)


@functools.partial(
    jax.jit,
    static_argnames=("patch_size", "compute_dtype", "out_dtype", "max_tile_rows"),
)
def _patch_embed_impl(x, weight, bias, *, patch_size, compute_dtype, out_dtype,
                      max_tile_rows=2048):
    p = patch_size
    B, C, H, W = x.shape
    E = weight.shape[0]

    # Pad bottom/right so H, W are divisible by the patch size (same as F.pad).
    pad_h = (-H) % p
    pad_w = (-W) % p
    if pad_h or pad_w:
        x = jnp.pad(x, ((0, 0), (0, 0), (0, pad_h), (0, pad_w)))
    H, W = H + pad_h, W + pad_w
    Hp, Wp = H // p, W // p

    K = C * p * p
    L = Hp * Wp

    # Patch extraction ("im2col") in the compute dtype (bf16 halves this
    # shuffle's HBM traffic; if x is already bf16 the cast is a no-op).
    # (B, C, Hp, p, Wp, p) -> (B, Hp, Wp, C, p, p) -> (B, L, K), (c, i, j) order.
    # TODO(synk): fuse this reshape/transpose into the kernel (read the raw
    # NCHW image through a (1, C, TH*p, W) block with strided in-kernel slices)
    # to drop the remaining patches write+read HBM round trip.
    patches = x.astype(compute_dtype).reshape(B, C, Hp, p, Wp, p)
    patches = patches.transpose(0, 2, 4, 1, 3, 5).reshape(B, L, K)

    # Conv weight (E, C, p, p) -> (K, E); bias -> (1, E), kept f32 so the
    # epilogue stays a single f32 VPU add on the f32 MXU accumulator.
    w2d = weight.reshape(E, K).T.astype(compute_dtype)
    b2d = bias.astype(jnp.float32).reshape(1, E)

    cb = jnp.dtype(compute_dtype).itemsize
    ob = jnp.dtype(out_dtype).itemsize

    # Double-buffered bytes streamed per output row (lane-padded VMEM tiles).
    row_bytes = 2 * (_round_up(K, 128) * cb + _round_up(E, 128) * ob)
    TL = _pick_row_tile(L, row_bytes, max_rows=max_tile_rows)

    # Explicit VMEM budget: streamed tiles (double-buffered) + resident weight
    # and bias (counted double-buffered to stay conservative), with 2x margin.
    tile_vmem = (_round_up(TL, 8) * row_bytes
                 + 2 * _round_up(K, 8) * _round_up(E, 128) * cb
                 + 2 * 8 * _round_up(E, 128) * 4)
    vmem_limit = int(min(128 << 20, max(32 << 20, 2 * tile_vmem)))

    cost = pl.CostEstimate(
        flops=2 * B * L * K * E + B * L * E,
        transcendentals=0,
        bytes_accessed=(B * L * K * cb           # patches read
                        + K * E * cb + E * 4     # weight + bias read
                        + B * L * E * ob),       # output write
    )

    out = pl.pallas_call(
        _patch_embed_kernel,
        out_shape=jax.ShapeDtypeStruct((B, L, E), out_dtype),
        grid=(B, L // TL),
        in_specs=[
            pl.BlockSpec((1, TL, K), lambda b, i: (b, i, 0)),
            # Constant block index -> Pallas fetches these once and keeps them
            # resident across the whole grid.  (pl.Buffered(1) could halve
            # their VMEM footprint; not needed at these weight sizes.)
            pl.BlockSpec((K, E), lambda b, i: (0, 0)),
            pl.BlockSpec((1, E), lambda b, i: (0, 0)),
        ],
        out_specs=pl.BlockSpec((1, TL, E), lambda b, i: (b, i, 0)),
        compiler_params=pltpu.CompilerParams(
            dimension_semantics=("parallel", "parallel"),
            vmem_limit_bytes=vmem_limit),
        cost_estimate=cost,
    )(patches, w2d, b2d)

    return out  # (B, Hp*Wp, E): already the PyTorch output layout.


def patch_embed_forward(x, weight, bias, patch_size, *,
                        compute_dtype=jnp.bfloat16, out_dtype=None):
    """Equivalent of PatchEmbed.forward with norm_layer=None (Identity).

    x:      (B, C, H, W)
    weight: (E, C, p, p)  Conv2d weight
    bias:   (E,)          Conv2d bias
    compute_dtype: matmul input dtype (bf16 default, f32 accumulation on the
                   MXU).  Pass jnp.float32 for closest parity with PyTorch.
    out_dtype:     output dtype; defaults to compute_dtype (bf16 halves the
                   output HBM writeback and matches downstream Swin blocks).
    returns (out, Hp, Wp) with out of shape (B, Hp*Wp, E).
    """
    if out_dtype is None:
        out_dtype = compute_dtype
    p = patch_size
    H, W = x.shape[2], x.shape[3]
    Hp = (H + (-H) % p) // p
    Wp = (W + (-W) % p) // p
    out = _patch_embed_impl(
        x, weight, bias, patch_size=patch_size,
        compute_dtype=jnp.dtype(compute_dtype), out_dtype=jnp.dtype(out_dtype))
    return out, Hp, Wp


if __name__ == "__main__":
    key = jax.random.PRNGKey(0)
    k_x, k_w, k_b = jax.random.split(key, 3)

    # Small, deterministic config: patch_size=4, in_c=4, embed_dim=32.
    B, C, H, W = 2, 4, 16, 16
    patch_size, embed_dim = 4, 32

    x = jax.random.normal(k_x, (B, C, H, W), dtype=jnp.float32)
    weight = jax.random.normal(k_w, (embed_dim, C, patch_size, patch_size),
                               dtype=jnp.float32) * 0.02
    bias = jax.random.normal(k_b, (embed_dim,), dtype=jnp.float32) * 0.02

    def conv_ref(xx, ww, bb, p):
        r = lax.conv_general_dilated(
            xx, ww, window_strides=(p, p), padding="VALID",
            dimension_numbers=("NCHW", "OIHW", "NCHW"),
            precision=lax.Precision.HIGHEST)
        r = r + bb[None, :, None, None]
        b_, e_, hp_, wp_ = r.shape
        return r.reshape(b_, e_, hp_ * wp_).transpose(0, 2, 1)

    ref = conv_ref(x, weight, bias, patch_size)

    # Default fast path: bf16 inputs + bf16 output, f32 MXU accumulation.
    out_bf16, Hp, Wp = patch_embed_forward(x, weight, bias, patch_size)
    out_bf16 = jax.block_until_ready(out_bf16)
    assert out_bf16.shape == (B, (H // patch_size) * (W // patch_size), embed_dim)
    assert out_bf16.dtype == jnp.bfloat16
    assert (Hp, Wp) == (H // patch_size, W // patch_size)
    err = float(jnp.max(jnp.abs(out_bf16.astype(jnp.float32) - ref)))
    assert err < 2e-2, f"bf16 path max_err={err}"

    # Opt-in full-precision path (closest parity with the PyTorch f32 conv).
    out_f32, _, _ = patch_embed_forward(x, weight, bias, patch_size,
                                        compute_dtype=jnp.float32)
    out_f32 = jax.block_until_ready(out_f32)
    assert out_f32.dtype == jnp.float32
    err = float(jnp.max(jnp.abs(out_f32 - ref)))
    assert err < 5e-3, f"f32 path max_err={err}"

    # Padding path: H, W not divisible by patch_size (PyTorch F.pad branch),
    # with L = Hp*Wp not a multiple of 8 (exercises the full-L tile fallback).
    B2, C2, H2, W2 = 1, 3, 10, 10
    x2 = jax.random.normal(k_x, (B2, C2, H2, W2), dtype=jnp.float32)
    w2 = jax.random.normal(k_w, (embed_dim, C2, patch_size, patch_size),
                           dtype=jnp.float32) * 0.02
    out2, Hp2, Wp2 = patch_embed_forward(x2, w2, bias, patch_size,
                                         compute_dtype=jnp.float32)
    out2 = jax.block_until_ready(out2)
    x2p = jnp.pad(x2, ((0, 0), (0, 0), (0, 2), (0, 2)))
    ref2 = conv_ref(x2p, w2, bias, patch_size)
    assert out2.shape == (B2, Hp2 * Wp2, embed_dim) and (Hp2, Wp2) == (3, 3)
    err = float(jnp.max(jnp.abs(out2 - ref2)))
    assert err < 5e-3, f"padded path max_err={err}"

    print("KERNEL_OK")
</pallas_src>

<mosaic_0001>
module attributes {stable_mosaic.version = 11 : i64} {
  func.func @_patch_embed_kernel(%arg0: i32, %arg1: i32, %arg2: memref<1x16x64xbf16, #tpu.memory_space<vmem>>, %arg3: memref<64x32xbf16, #tpu.memory_space<vmem>>, %arg4: memref<1x32xf32, #tpu.memory_space<vmem>>, %arg5: memref<1x16x32xbf16, #tpu.memory_space<vmem>>) attributes {dimension_semantics = [#tpu.dimension_semantics<parallel>, #tpu.dimension_semantics<parallel>], iteration_bounds = array<i64: 2, 1>, scalar_prefetch = 0 : i64, scratch_operands = 0 : i64, tpu.core_type = #tpu.core_type<tc>, window_params = [{transform_indices = @transform_0, window_bounds = array<i64: 1, 16, 64>}, {pipeline_mode = #tpu.pipeline_mode<synchronous>, transform_indices = @transform_1, window_bounds = array<i64: 64, 32>}, {pipeline_mode = #tpu.pipeline_mode<synchronous>, transform_indices = @transform_2, window_bounds = array<i64: 1, 32>}, {transform_indices = @transform_3, window_bounds = array<i64: 1, 16, 32>}]} {
    %c0 = arith.constant 0 : index
    %c0_0 = arith.constant 0 : index
    %c0_1 = arith.constant 0 : index
    %0 = vector.load %arg2[%c0, %c0_0, %c0_1] : memref<1x16x64xbf16, #tpu.memory_space<vmem>>, vector<1x16x64xbf16>
    %1 = vector.shape_cast %0 : vector<1x16x64xbf16> to vector<16x64xbf16>
    %c0_2 = arith.constant 0 : index
    %c0_3 = arith.constant 0 : index
    %2 = vector.load %arg3[%c0_2, %c0_3] : memref<64x32xbf16, #tpu.memory_space<vmem>>, vector<64x32xbf16>
    %cst = arith.constant dense<0.000000e+00> : vector<16x32xf32>
    %3 = tpu.matmul %1, %2, %cst {dimension_numbers = #tpu.dot_dimension_numbers<[1], [0], [0], [1], [0, 0, 1, 1], [], []>} : vector<16x64xbf16>, vector<64x32xbf16>, vector<16x32xf32> -> vector<16x32xf32>
    %c0_4 = arith.constant 0 : index
    %c0_5 = arith.constant 0 : index
    %4 = vector.load %arg4[%c0_4, %c0_5] : memref<1x32xf32, #tpu.memory_space<vmem>>, vector<1x32xf32>
    %5 = vector.broadcast %4 : vector<1x32xf32> to vector<16x32xf32>
    %6 = arith.addf %3, %5 : vector<16x32xf32>
    %7 = arith.truncf %6 : vector<16x32xf32> to vector<16x32xbf16>
    %c0_6 = arith.constant 0 : index
    %c0_7 = arith.constant 0 : index
    %c0_8 = arith.constant 0 : index
    %8 = vector.load %arg5[%c0_6, %c0_7, %c0_8] : memref<1x16x32xbf16, #tpu.memory_space<vmem>>, vector<1x16x32xbf16>
    %9 = vector.shape_cast %8 : vector<1x16x32xbf16> to vector<16x32xbf16>
    %10 = vector.shape_cast %7 : vector<16x32xbf16> to vector<1x16x32xbf16>
    tpu.vector_store %arg5[%c0_6, %c0_7, %c0_8], %10 {strides = array<i32>} : memref<1x16x32xbf16, #tpu.memory_space<vmem>>, vector<1x16x32xbf16>,
    return
  }
  func.func @transform_0(%arg0: i32, %arg1: i32) -> (i32, i32, i32) {
    %c0_i32 = arith.constant 0 : i32
    %c0_i32_0 = arith.constant 0 : i32
    return %arg0, %arg1, %c0_i32 : i32, i32, i32
  }
  func.func @transform_1(%arg0: i32, %arg1: i32) -> (i32, i32) {
    %c0_i32 = arith.constant 0 : i32
    %c0_i32_0 = arith.constant 0 : i32
    %c0_i32_1 = arith.constant 0 : i32
    return %c0_i32, %c0_i32_0 : i32, i32
  }
  func.func @transform_2(%arg0: i32, %arg1: i32) -> (i32, i32) {
    %c0_i32 = arith.constant 0 : i32
    %c0_i32_0 = arith.constant 0 : i32
    %c0_i32_1 = arith.constant 0 : i32
    return %c0_i32, %c0_i32_0 : i32, i32
  }
  func.func @transform_3(%arg0: i32, %arg1: i32) -> (i32, i32, i32) {
    %c0_i32 = arith.constant 0 : i32
    %c0_i32_0 = arith.constant 0 : i32
    return %arg0, %arg1, %c0_i32 : i32, i32, i32
  }
}

</mosaic_0001>

<llo_original>
// kernel: _patch_embed_impl.1
$region0: #{_patch_embed_impl.1}
  #allocation0 [shape = 'u32[]', space=smem, size = 0x4, offset = 0x4, fixed_abs, tag = 'smem constant byte address 0x4 - core index']
  #allocation1 [shape = 'u32[72,128]{1,0:T(1,128)}', space=vmem, size = 0x9000, scoped, tag = 'internal scratch']
  %s0 = inlined_call_operand.vmem [shape: bf16[2,16,64], index: 0, kind: input, shape index: {}]
  %s1 = inlined_call_operand.vmem [shape: bf16[64,32], index: 1, kind: input, shape index: {}]
  %s2 = inlined_call_operand.vmem [shape: f32[1,32], index: 2, kind: input, shape index: {}]
  %s3 = inlined_call_operand.hbm [shape: bf16[2,16,32], index: 3, kind: output, shape index: {}]
  %s4 = sld [smem:[#allocation0]]
  $region45: #{_patch_embed_impl.1} parent=0
    _
  %s6 = ssub.s32 1, %s4
  %s7 = scalar_select 0, %s6, %s4
  $region1: #{_patch_embed_impl.1} parent=0
    #allocation2 [shape = 'u8[8192]{0}', space=vmem, size = 0x2000, scoped, tag = 'output window, operand 0']
    #allocation3 [shape = 's32[2]{0}', space=sflag, size = 0x8, scoped, tag = 'scoped memory for _patch_embed_impl.1']
    %8 = vsyncpa [#allocation3], 0
    %s9 = scalar_lea.sflag [#allocation3], 1
    %10 = vsyncpa %s9, 0
    loop: start=0, step=1, limit=4
    $region2: #{_patch_embed_impl.1} parent=1 // loop_pre_header
      _
    $region3: #{_patch_embed_impl.1} parent=1 // loop_header
      %s12 = sphi 0, %s16
      %p13 = scmp.ge.s32.totalorder %s12, 4
      %s19 = sphi 0, %s31
      %s20 = sphi 0, %s27
      %s21 = sphi 0, %s19
      %s22 = sphi 0, %s20
      %s23 = sphi 0, %s21
      %s24 = sphi 0, %s22
      %s36 = sphi 0, %s38
      %s39 = sphi 0, %s36
      %s40 = sphi 0, %s39
      %s56 = sphi 0, %s40
      %s60 = sphi 0, %s60
      %s62 = sphi 0, %s60
      %s63 = sphi 0, %s62
      %s77 = sphi 0, %s63
      %s81 = sphi 0, %s81
      %s83 = sphi 0, %s81
      %s84 = sphi 0, %s83
      %s98 = sphi 0, %s84
      %s106 = sphi 0, %s108
      %s109 = sphi 0, %s106
      %s110 = sphi 0, %s109
      %s126 = sphi 0, %s110
    $region4: #{_patch_embed_impl.1} parent=1 // loop_header_branch
      %15 = sbr.rel (%p13) target = $region8
    $region5: #{_patch_embed_impl.1} parent=1 // loop_body
      %s17 = ssub.s32 %s12, 1
      %s18 = ssub.s32 %s12, 2
      %s25 = sadd.s32 1, %s20
      %p26 = scmp.ge.s32.totalorder %s25, 1
      %s27 = scalar_select %p26, 0, %s25
      %s28 = sadd.s32 1, %s19
      %s29 = scalar_select %p26, %s28, %s19
      %p30 = scmp.ge.s32.totalorder %s29, 2
      %s31 = scalar_select %p30, 0, %s29
      %s32 = ssub.s32 %s19, %s31
      %s33 = ssub.s32 %s20, %s27
      %s34 = sor.u32 %s32, %s33
      %p35 = scmp.eq.s32.totalorder %s34, 0
      %s37 = sadd.s32 %s36, 1
      %s38 = scalar_select %p35, %s36, %s37
      %p41 = pneg %p35
      %p42 = scmp.eq.s32.totalorder %s12, 1
      %p43 = por %p41, %p42
      %p44 = scmp.ne.s32.totalorder %s36, %s39
      %p45 = scmp.eq.s32.totalorder %s12, 0
      %p46 = por %p44, %p45
      %p47 = scmp.ne.s32.totalorder %s36, %s39
      %p48 = scmp.eq.s32.totalorder %s17, 1
      %p49 = por %p47, %p48
      %p50 = scmp.ne.s32.totalorder %s39, %s40
      %p51 = scmp.eq.s32.totalorder %s17, 0
      %p52 = por %p50, %p51
      %p53 = scmp.ne.s32.totalorder %s39, %s40
      %p54 = scmp.eq.s32.totalorder %s18, 1
      %p55 = por %p53, %p54
      %p57 = scmp.ne.s32.totalorder %s40, %s56
      %p58 = scmp.eq.s32.totalorder %s18, 0
      %p59 = por %p57, %p58
      %s61 = sadd.s32 %s60, 1
      %p64 = scmp.eq.s32.totalorder %s12, 1
      %p65 = scmp.ne.s32.totalorder %s60, %s62
      %p66 = scmp.eq.s32.totalorder %s12, 0
      %p67 = por %p65, %p66
      %p68 = scmp.ne.s32.totalorder %s60, %s62
      %p69 = scmp.eq.s32.totalorder %s17, 1
      %p70 = por %p68, %p69
      %p71 = scmp.ne.s32.totalorder %s62, %s63
      %p72 = scmp.eq.s32.totalorder %s17, 0
      %p73 = por %p71, %p72
      %p74 = scmp.ne.s32.totalorder %s62, %s63
      %p75 = scmp.eq.s32.totalorder %s18, 1
      %p76 = por %p74, %p75
      %p78 = scmp.ne.s32.totalorder %s63, %s77
      %p79 = scmp.eq.s32.totalorder %s18, 0
      %p80 = por %p78, %p79
      %s82 = sadd.s32 %s81, 1
      %p85 = scmp.eq.s32.totalorder %s12, 1
      %p86 = scmp.ne.s32.totalorder %s81, %s83
      %p87 = scmp.eq.s32.totalorder %s12, 0
      %p88 = por %p86, %p87
      %p89 = scmp.ne.s32.totalorder %s81, %s83
      %p90 = scmp.eq.s32.totalorder %s17, 1
      %p91 = por %p89, %p90
      %p92 = scmp.ne.s32.totalorder %s83, %s84
      %p93 = scmp.eq.s32.totalorder %s17, 0
      %p94 = por %p92, %p93
      %p95 = scmp.ne.s32.totalorder %s83, %s84
      %p96 = scmp.eq.s32.totalorder %s18, 1
      %p97 = por %p95, %p96
      %p99 = scmp.ne.s32.totalorder %s84, %s98
      %p100 = scmp.eq.s32.totalorder %s18, 0
      %p101 = por %p99, %p100
      %s102 = ssub.s32 %s19, %s31
      %s103 = ssub.s32 %s20, %s27
      %s104 = sor.u32 %s102, %s103
      %p105 = scmp.eq.s32.totalorder %s104, 0
      %s107 = sadd.s32 %s106, 1
      %s108 = scalar_select %p105, %s106, %s107
      %p111 = pneg %p105
      %p112 = scmp.eq.s32.totalorder %s12, 1
      %p113 = por %p111, %p112
      %p114 = scmp.ne.s32.totalorder %s106, %s109
      %p115 = scmp.eq.s32.totalorder %s12, 0
      %p116 = por %p114, %p115
      %p117 = scmp.ne.s32.totalorder %s106, %s109
      %p118 = scmp.eq.s32.totalorder %s17, 1
      %p119 = por %p117, %p118
      %p120 = scmp.ne.s32.totalorder %s109, %s110
      %p121 = scmp.eq.s32.totalorder %s17, 0
      %p122 = por %p120, %p121
      %p123 = scmp.ne.s32.totalorder %s109, %s110
      %p124 = scmp.eq.s32.totalorder %s18, 1
      %p125 = por %p123, %p124
      %p127 = scmp.ne.s32.totalorder %s110, %s126
      %p128 = scmp.eq.s32.totalorder %s18, 0
      %p129 = por %p127, %p128
      %p130 = scmp.le.s32.totalorder 1, %s12
      %p131 = scmp.lt.s32.totalorder %s12, 3
      %p132 = pnand %p130, %p131
      %p133 = pneg %p132
      // Predicated region
      $region9: #{_patch_embed_impl.1} parent=5 // pred_check
        _
      $region10: #{_patch_embed_impl.1} parent=5 // pred_check_branch
        %135 = sbr.rel (%p132) target = $region12
      $region11: #{_patch_embed_impl.1} parent=5 // pred_region
        %s136 = ssub.s32 %s12, 1
        // Predicated region
        $region13: #{_patch_embed_impl.1} parent=11 // pred_check
          %p137 = pneg %p73
        $region14: #{_patch_embed_impl.1} parent=11 // pred_check_branch
          %139 = sbr.rel (%p137) target = $region16
        $region15: #{_patch_embed_impl.1} parent=11 // pred_region
          _
        $region16: #{_patch_embed_impl.1} parent=11 // pred_fallthru
          _
        // Predicated region
        $region17: #{_patch_embed_impl.1} parent=11 // pred_check
          %p140 = pneg %p94
        $region18: #{_patch_embed_impl.1} parent=11 // pred_check_branch
          %142 = sbr.rel (%p140) target = $region20
        $region19: #{_patch_embed_impl.1} parent=11 // pred_region
          _
        $region20: #{_patch_embed_impl.1} parent=11 // pred_fallthru
          _
      $region12: #{_patch_embed_impl.1} parent=5 // pred_fallthru
        _
      %p143 = scmp.lt.s32.totalorder %s12, 2
      // Predicated region
      $region21: #{_patch_embed_impl.1} parent=5 // pred_check
        %p144 = pneg %p143
      $region22: #{_patch_embed_impl.1} parent=5 // pred_check_branch
        %146 = sbr.rel (%p144) target = $region24
      $region23: #{_patch_embed_impl.1} parent=5 // pred_region
        // Predicated region
        $region25: #{_patch_embed_impl.1} parent=23 // pred_check
          %p147 = pneg %p46
        $region26: #{_patch_embed_impl.1} parent=23 // pred_check_branch
          %149 = sbr.rel (%p147) target = $region28
        $region27: #{_patch_embed_impl.1} parent=23 // pred_region
          %s150 = smul.u32 2, %s20
          %p151 = scmp.lt.s32.totalorder %s19, 1
          %s152 = scalar_select %p151, %s19, 1
          %p153 = scmp.lt.s32.totalorder %s150, 1
          %s154 = scalar_select %p153, %s150, 1
          %s155 = smul.addr %s152, 2
          %s156 = sadd.s32 %s154, %s155
          %s157 = smul.addr %s156, 4
          %s158 = scalar_lea.vmem %s0, %s157
          %s159 = smul.u32 2, %s20
        $region28: #{_patch_embed_impl.1} parent=23 // pred_fallthru
          _
      $region24: #{_patch_embed_impl.1} parent=5 // pred_fallthru
        _
      %p160 = scmp.le.s32.totalorder 1, %s12
      %p161 = scmp.lt.s32.totalorder %s12, 3
      %p162 = pnand %p160, %p161
      %p163 = pneg %p162
      // Predicated region
      $region29: #{_patch_embed_impl.1} parent=5 // pred_check
        _
      $region30: #{_patch_embed_impl.1} parent=5 // pred_check_branch
        %165 = sbr.rel (%p162) target = $region32
      $region31: #{_patch_embed_impl.1} parent=5 // pred_region
        %s166 = ssub.s32 %s12, 1
        %s167 = smul.u32 2, %s22
        %p168 = scmp.lt.s32.totalorder %s21, 1
        %s169 = scalar_select %p168, %s21, 1
        %p170 = scmp.lt.s32.totalorder %s167, 1
        %s171 = scalar_select %p170, %s167, 1
        %s172 = smul.addr %s169, 2
        %s173 = sadd.s32 %s171, %s172
        %s174 = smul.addr %s173, 4
        %s175 = scalar_lea.vmem %s0, %s174
        %p176 = pneg %p52
        %p177 = pneg %p49
        %p178 = pneg %p73
        %p179 = pneg %p70
        %p180 = pneg %p94
        %p181 = pneg %p91
        %p182 = pneg %p122
        %p183 = pneg %p119
        %s184 = sand.u32 %s109, 1
        %s185 = scalar_lea.sflag [#allocation3], %s184
        %s186 = sand.u32 %s109, 1
        %s187 = smul.addr %s186, 8
        %s188 = scalar_lea.vmem [#allocation2], %s187
        %s189 = smul.u32 2, %s22
        %p190 = scmp.lt.s32.totalorder %s21, 1
        %s191 = scalar_select %p190, %s21, 1
        %p192 = scmp.lt.s32.totalorder %s189, 1
        %s193 = scalar_select %p192, %s189, 1
        %s194 = smul.addr %s191, 2
        %s195 = sadd.s32 %s193, %s194
        %s196 = smul.addr %s195, 4
        %s197 = scalar_lea.vmem %s0, %s196
        %s198 = smul.u32 2, %s22
        %s199 = smul.u32 2, %s22
        %v201 = vld [vmem:[%s197] sm:$0xf]
        %v202 = vld [vmem:[%s197 + $0x4] sm:$0xf]
        %v203 = vld [vmem:[%s1] sm:$0xf]
        %v204 = vld [vmem:[%s1 + $0x4] sm:$0xf]
        %v205 = vld [vmem:[%s1 + $0x8] sm:$0xf]
        %v206 = vld [vmem:[%s1 + $0xc] sm:$0xf]
        %v207 = vld [vmem:[%s1 + $0x10] sm:$0xf]
        %v208 = vld [vmem:[%s1 + $0x14] sm:$0xf]
        %v209 = vld [vmem:[%s1 + $0x18] sm:$0xf]
        %v210 = vld [vmem:[%s1 + $0x1c] sm:$0xf]
        %v211 = vld [vmem:[%s2] sm:$0x1]
        %v213 = vperm.slane %v211, 0
        %v217 = vunpack.c.l.b16 %v201
        %v218 = vunpack.c.l.b16 %v202
        %v219 = vpack.c.b16 %v218, %v217
        %v228 = vunpack.c.l.b16 %v203
        %v229 = vunpack.c.l.b16 %v204
        %v230 = vunpack.c.l.b16 %v205
        %v231 = vunpack.c.l.b16 %v206
        %v232 = vunpack.c.l.b16 %v207
        %v233 = vunpack.c.l.b16 %v208
        %v234 = vunpack.c.l.b16 %v209
        %v235 = vunpack.c.l.b16 %v210
        %v236 = vpack.c.b16 %v229, %v228
        %v237 = vpack.c.b16 %v231, %v230
        %v238 = vpack.c.b16 %v233, %v232
        %v239 = vpack.c.b16 %v235, %v234
        %vm244 = vcmask 523264
        %v246 = vsel %vm244, %v219, 0
        %248 = vmatpush.bf16.msra.mxu0 0
        %249 = vmatpush.bf16.msra.mxu0 0
        %250 = vmatpush.bf16.msra.mxu0 0
        %251 = vmatpush.bf16.msra.mxu0 0
        %252 = vmatpush.bf16.msra.mxu0 %v239
        %253 = vmatpush.bf16.msra.mxu0 %v238
        %254 = vmatpush.bf16.msra.mxu0 %v237
        %255 = vmatpush.bf16.msra.mxu0 %v236
        %256 = vmatmul.bf16.gmra.mxu0 %v246
        %v257 = vpop.f32.mrf.mxu0
        %v258 = vadd.f32 %v213, %v257
        %v259 = vpop.f32.mrf.mxu0
        %v260 = vadd.f32 %v213, %v259
        %261 = vdwg.mxu0
        %v262 = vpack.c.bf16 %v258, %v258
        %v263 = vpack.c.bf16 %v260, %v260
        %vm264 = vcmask 257024
        %265 = vst.msk [vmem:[%s188] sm:$0xf] %vm264, %v262
        %266 = vst.msk [vmem:[%s188 + $0x4] sm:$0xf] %vm264, %v263
        %s267 = sand.u32 %s109, 1
        %s268 = scalar_lea.sflag [#allocation3], %s267
        %s269 = sand.u32 %s109, 1
        %s270 = smul.addr %s269, 8
        %s271 = scalar_lea.vmem [#allocation2], %s270
        // Predicated region
        $region33: #{_patch_embed_impl.1} parent=31 // pred_check
          %p272 = pneg %p119
        $region34: #{_patch_embed_impl.1} parent=31 // pred_check_branch
          %274 = sbr.rel (%p272) target = $region36
        $region35: #{_patch_embed_impl.1} parent=31 // pred_region
          %s275 = smul.u32 2, %s22
          %277 = vsyncadd %s268, 0
          %s278 = smul.addr %s21, 2
          %s279 = sadd.s32 %s275, %s278
          %s280 = smul.addr %s279, 4
          %s281 = scalar_lea.hbm %s3, %s280
          %s282 = sshll.u32 %s271, 4
          %s283 = int_to_ptr.vmem [resolvable:$true] %s282
          %s284 = sshll.u32 %s281, 4
          %s285 = int_to_ptr.hbm [resolvable:$true] %s284
          %290 = dma.vmem_to_hbm [thread:$0]  %s283, 128, %s285, %s268, 64, 64, 4
        $region36: #{_patch_embed_impl.1} parent=31 // pred_fallthru
          _
      $region32: #{_patch_embed_impl.1} parent=5 // pred_fallthru
        _
      %p291 = scmp.le.s32.totalorder 2, %s12
      // Predicated region
      $region37: #{_patch_embed_impl.1} parent=5 // pred_check
        %p292 = pneg %p291
      $region38: #{_patch_embed_impl.1} parent=5 // pred_check_branch
        %294 = sbr.rel (%p292) target = $region40
      $region39: #{_patch_embed_impl.1} parent=5 // pred_region
        %s295 = ssub.s32 %s12, 2
        // Predicated region
        $region41: #{_patch_embed_impl.1} parent=39 // pred_check
          %p296 = pneg %p125
        $region42: #{_patch_embed_impl.1} parent=39 // pred_check_branch
          %298 = sbr.rel (%p296) target = $region44
        $region43: #{_patch_embed_impl.1} parent=39 // pred_region
          %s299 = sand.u32 %s110, 1
          %s300 = scalar_lea.sflag [#allocation3], %s299
          %s301 = sand.u32 %s110, 1
          %s302 = smul.addr %s301, 8
          %s303 = scalar_lea.vmem [#allocation2], %s302
          %305 = dma.done %s300, 128
        $region44: #{_patch_embed_impl.1} parent=39 // pred_fallthru
          _
      $region40: #{_patch_embed_impl.1} parent=5 // pred_fallthru
        _
    $region6: #{_patch_embed_impl.1} parent=1 // loop_footer
      %s16 = sadd.s32 1, %s12
    $region7: #{_patch_embed_impl.1} parent=1 // loop_footer_branch
      %11 = sbr.rel target = $region3
    $region8: #{_patch_embed_impl.1} parent=1 // loop_exit
      _
    %306 = vsyncpa [#allocation3], 1
    %s307 = scalar_lea.sflag [#allocation3], 1
    %308 = vsyncpa %s307, 1

</llo_original>
